<compile_context>
chip_gen: v6e
topology: v6e:2x2x1
jax: 0.10.0
libtpu: 0.0.40
codegen_flags: <defaults>
</compile_context>

<pallas_src>
import jax
import jax.numpy as jnp
from jax.experimental import pallas as pl
from jax.experimental.pallas import tpu as pltpu


def _round_up(x, m):
    return ((x + m - 1) // m) * m


def _largest_aligned_divisor(total, align, cap):
    """Largest multiple of `align` that divides `total` and is <= max(cap, align)."""
    cap = max(cap, align)
    best = align
    d = align
    while d <= min(total, cap):
        if total % d == 0:
            best = d
        d += align
    return best


def _encoder_kernel(x_ref, w_ref, b_ref, out_ref):
    k = pl.program_id(2)

    @pl.when(k == 0)
    def _init():
        out_ref[...] = jnp.zeros_like(out_ref)

    out_ref[...] += jnp.dot(x_ref[...], w_ref[...],
                            preferred_element_type=jnp.float32)

    @pl.when(k == pl.num_programs(2) - 1)
    def _bias():
        out_ref[...] += b_ref[...]


def _encoder_kernel_fused(x_ref, w_ref, b_ref, out_ref, reg_ref):
    # Only used when the M grid axis has extent 1: every (j, k) weight tile is then
    # visited exactly once, so the L1 partial needs no i==0 guard and its output
    # block (indexed by j only) is never revisited along a parallel axis.
    k = pl.program_id(2)

    @pl.when(k == 0)
    def _init():
        out_ref[...] = jnp.zeros_like(out_ref)
        reg_ref[...] = jnp.zeros_like(reg_ref)

    out_ref[...] += jnp.dot(x_ref[...], w_ref[...],
                            preferred_element_type=jnp.float32)

    tile_l1 = jnp.sum(jnp.abs(w_ref[...]).astype(jnp.float32))
    reg_ref[...] = reg_ref[...] + tile_l1

    @pl.when(k == pl.num_programs(2) - 1)
    def _bias():
        out_ref[...] += b_ref[...]


def encoder_forward(x, w, bias, *, compute_dtype=jnp.bfloat16,
                    tm_cap=1024, tn_cap=512, tk_cap=1024):
    """Encoder forward: returns (x @ w + bias, ||w||_1).

    Matmul inputs are cast to `compute_dtype` (bf16 default) for MXU throughput;
    accumulation, bias epilogue and the regularizer are float32.
    """
    n, h = x.shape
    h2, o = w.shape
    assert h == h2, (h, h2)

    w_full = w
    in_dtype = jnp.dtype(compute_dtype)
    itemsize = in_dtype.itemsize

    # ---- padded problem dims (lane/sublane alignment) ----
    m_pad = _round_up(n, 8)
    k_pad = _round_up(h, 128)
    o_pad = _round_up(o, 128)

    # ---- tile selection ----
    if m_pad <= tm_cap:
        tm = m_pad                          # weight streams through HBM exactly once
    else:
        tm = tm_cap
        m_pad = _round_up(m_pad, tm)
    tk = _largest_aligned_divisor(k_pad, 128, tk_cap)
    tn = _largest_aligned_divisor(o_pad, 128, tn_cap)
    n_i = m_pad // tm
    # v7x has 2 TensorCores: keep at least one "parallel" axis with extent >= 2.
    if n_i == 1 and o_pad // tn < 2 and o_pad >= 256:
        tn = _largest_aligned_divisor(o_pad, 128, o_pad // 2)
    n_j = o_pad // tn
    n_k = k_pad // tk

    fuse_reg = (n_i == 1)

    # ---- operand prep (pad only when actually needed) ----
    x_c = x.astype(in_dtype)
    w_c = w.astype(in_dtype)
    b_c = bias.astype(jnp.float32)
    if m_pad > n or k_pad > h:
        x_c = jnp.pad(x_c, ((0, m_pad - n), (0, k_pad - h)))
    if k_pad > h or o_pad > o:
        w_c = jnp.pad(w_c, ((0, k_pad - h), (0, o_pad - o)))
    if o_pad > o:
        b_c = jnp.pad(b_c, (0, o_pad - o))
    b_c = b_c.reshape(1, o_pad)

    grid = (n_i, n_j, n_k)
    in_specs = [
        pl.BlockSpec((tm, tk), lambda i, j, k: (i, k)),
        pl.BlockSpec((tk, tn), lambda i, j, k: (k, j)),
        pl.BlockSpec((1, tn), lambda i, j, k: (0, j)),
    ]
    out_spec_y = pl.BlockSpec((tm, tn), lambda i, j, k: (i, j))

    cost = pl.CostEstimate(
        flops=2 * m_pad * k_pad * o_pad,
        transcendentals=0,
        bytes_accessed=int(
            m_pad * k_pad * itemsize        # x
            + k_pad * o_pad * itemsize      # w
            + o_pad * 4                     # bias
            + m_pad * o_pad * 4             # out
        ),
    )

    # VMEM footprint: double-buffered x / w / bias tiles, f32 output tile, reg partial.
    vmem_est = (
        2 * (tm * tk + tk * tn) * itemsize
        + 2 * tn * 4
        + 2 * tm * tn * 4
        + 2 * 8 * 128 * 4
    )
    # 48 MiB cap: well under v7x's 64 MiB physical VMEM, generous on v5e/v6e (128 MiB).
    vmem_limit = int(min(max(2 * vmem_est, 8 * 1024 * 1024), 48 * 1024 * 1024))

    cparams = pltpu.CompilerParams(
        dimension_semantics=("parallel", "parallel", "arbitrary"),
        vmem_limit_bytes=vmem_limit,
    )

    if fuse_reg:
        out_p, reg_partial = pl.pallas_call(
            _encoder_kernel_fused,
            out_shape=(
                jax.ShapeDtypeStruct((m_pad, o_pad), jnp.float32),
                jax.ShapeDtypeStruct((n_j, 8, 128), jnp.float32),
            ),
            grid_spec=pltpu.PrefetchScalarGridSpec(
                num_scalar_prefetch=0,
                grid=grid,
                in_specs=in_specs,
                out_specs=(
                    out_spec_y,
                    pl.BlockSpec((1, 8, 128), lambda i, j, k: (j, 0, 0)),
                ),
            ),
            compiler_params=cparams,
            cost_estimate=cost,
        )(x_c, w_c, b_c)
        # Every element of a j-block holds the same accumulated value; read [j, 0, 0].
        reg = jnp.sum(reg_partial[:, 0, 0])
    else:
        out_p = pl.pallas_call(
            _encoder_kernel,
            out_shape=jax.ShapeDtypeStruct((m_pad, o_pad), jnp.float32),
            grid_spec=pltpu.PrefetchScalarGridSpec(
                num_scalar_prefetch=0,
                grid=grid,
                in_specs=in_specs,
                out_specs=out_spec_y,
            ),
            compiler_params=cparams,
            cost_estimate=cost,
        )(x_c, w_c, b_c)
        # When the M axis is tiled, the fused accumulator would be revisited across a
        # parallel axis, so keep the (exact) wrapper-side reduction instead.
        reg = jnp.sum(jnp.abs(w_full)).astype(jnp.float32)

    out = out_p
    if m_pad > n or o_pad > o:
        out = out_p[:n, :o]
    return out, reg


def init_encoder_params(key, hidden_dim, output_dim):
    # Matches LinearLayer.__init__: uniform(-scale, scale), scale = sqrt(6/(in+out))
    scale = 1.0 * jnp.sqrt(6.0 / (hidden_dim + output_dim))
    kw, kb = jax.random.split(key)
    w = jax.random.uniform(kw, (hidden_dim, output_dim), jnp.float32,
                           minval=-scale, maxval=scale)
    b = jax.random.uniform(kb, (output_dim,), jnp.float32,
                           minval=-scale, maxval=scale)
    return w, b


if __name__ == "__main__":
    key = jax.random.PRNGKey(0)
    k_x, k_p, k_x2, k_p2 = jax.random.split(key, 4)

    # --- 1) Tiny shapes matching the module's intent (single padded tile, fused reg) ---
    batch, hidden_dim, output_dim = 8, 32, 16
    x = jax.random.normal(k_x, (batch, hidden_dim), jnp.float32)
    w, bias = init_encoder_params(k_p, hidden_dim, output_dim)

    ref_out = jnp.dot(x, w, precision=jax.lax.Precision.HIGHEST) + bias
    ref_reg = jnp.sum(jnp.abs(w))

    out, reg = encoder_forward(x, w, bias)                       # bf16 MXU inputs (default)
    out = jax.block_until_ready(out)
    reg = jax.block_until_ready(reg)
    assert out.shape == (batch, output_dim)
    assert jnp.allclose(out, ref_out, atol=2e-2, rtol=2e-2)
    assert jnp.allclose(reg, ref_reg, atol=1e-3, rtol=1e-3)

    out_f, reg_f = encoder_forward(x, w, bias, compute_dtype=jnp.float32)   # exact path
    out_f = jax.block_until_ready(out_f)
    reg_f = jax.block_until_ready(reg_f)
    assert jnp.allclose(out_f, ref_out, atol=1e-3, rtol=1e-3)
    assert jnp.allclose(reg_f, ref_reg, atol=1e-4, rtol=1e-4)

    # --- 2) Aligned shapes: no padding, multi-tile N split (>=2 for v7x), fused reg ---
    batch2, hidden2, output2 = 256, 512, 384
    x2 = jax.random.normal(k_x2, (batch2, hidden2), jnp.float32)
    w2, bias2 = init_encoder_params(k_p2, hidden2, output2)

    ref_out2 = jnp.dot(x2, w2, precision=jax.lax.Precision.HIGHEST) + bias2
    ref_reg2 = jnp.sum(jnp.abs(w2))

    out2, reg2 = encoder_forward(x2, w2, bias2)                  # bf16 default
    out2 = jax.block_until_ready(out2)
    reg2 = jax.block_until_ready(reg2)
    assert out2.shape == (batch2, output2)
    assert jnp.allclose(out2, ref_out2, atol=5e-2, rtol=5e-2)
    assert jnp.allclose(reg2, ref_reg2, atol=1e-2, rtol=1e-3)

    # --- 3) Force an M split (tm_cap) to exercise the non-fused reg path, f32 compute ---
    out3, reg3 = encoder_forward(x2, w2, bias2, compute_dtype=jnp.float32, tm_cap=128)
    out3 = jax.block_until_ready(out3)
    reg3 = jax.block_until_ready(reg3)
    assert jnp.allclose(out3, ref_out2, atol=1e-2, rtol=1e-2)
    assert jnp.allclose(reg3, ref_reg2, atol=1e-4, rtol=1e-4)

    # TODO(synk): PyTorch reference computes in float64; TPU path is float32 (bf16 MXU inputs).
    print("KERNEL_OK")
</pallas_src>

<mosaic_0001>
module attributes {stable_mosaic.version = 11 : i64} {
  func.func @_encoder_kernel_fused(%arg0: i32, %arg1: i32, %arg2: i32, %arg3: memref<8x128xbf16, #tpu.memory_space<vmem>>, %arg4: memref<128x128xbf16, #tpu.memory_space<vmem>>, %arg5: memref<1x128xf32, #tpu.memory_space<vmem>>, %arg6: memref<8x128xf32, #tpu.memory_space<vmem>>, %arg7: memref<1x8x128xf32, #tpu.memory_space<vmem>>) attributes {dimension_semantics = [#tpu.dimension_semantics<parallel>, #tpu.dimension_semantics<parallel>, #tpu.dimension_semantics<arbitrary>], iteration_bounds = array<i64: 1, 1, 1>, scalar_prefetch = 0 : i64, scratch_operands = 0 : i64, tpu.core_type = #tpu.core_type<tc>, window_params = [{transform_indices = @transform_0, window_bounds = array<i64: 8, 128>}, {transform_indices = @transform_1, window_bounds = array<i64: 128, 128>}, {transform_indices = @transform_2, window_bounds = array<i64: 1, 128>}, {transform_indices = @transform_3, window_bounds = array<i64: 8, 128>}, {transform_indices = @transform_4, window_bounds = array<i64: 1, 8, 128>}]} {
    %c0_i32 = arith.constant 0 : i32
    %0 = arith.cmpi eq, %arg2, %c0_i32 : i32
    %1 = arith.extui %0 : i1 to i32
    %c0_i32_0 = arith.constant 0 : i32
    %2 = arith.cmpi ne, %1, %c0_i32_0 : i32
    scf.if %2 {
      %cst_19 = arith.constant 0.000000e+00 : f32
      %23 = vector.broadcast %cst_19 : f32 to vector<8x128xf32>
      %c0_20 = arith.constant 0 : index
      %c0_21 = arith.constant 0 : index
      %24 = vector.load %arg6[%c0_20, %c0_21] : memref<8x128xf32, #tpu.memory_space<vmem>>, vector<8x128xf32>
      tpu.vector_store %arg6[%c0_20, %c0_21], %23 {strides = array<i32>} : memref<8x128xf32, #tpu.memory_space<vmem>>, vector<8x128xf32>,
      %cst_22 = arith.constant 0.000000e+00 : f32
      %25 = vector.broadcast %cst_22 : f32 to vector<1x8x128xf32>
      %c0_23 = arith.constant 0 : index
      %c0_24 = arith.constant 0 : index
      %c0_25 = arith.constant 0 : index
      %26 = vector.load %arg7[%c0_23, %c0_24, %c0_25] : memref<1x8x128xf32, #tpu.memory_space<vmem>>, vector<1x8x128xf32>
      tpu.vector_store %arg7[%c0_23, %c0_24, %c0_25], %25 {strides = array<i32>} : memref<1x8x128xf32, #tpu.memory_space<vmem>>, vector<1x8x128xf32>,
    } else {
    }
    %c0 = arith.constant 0 : index
    %c0_1 = arith.constant 0 : index
    %3 = vector.load %arg6[%c0, %c0_1] : memref<8x128xf32, #tpu.memory_space<vmem>>, vector<8x128xf32>
    %c0_2 = arith.constant 0 : index
    %c0_3 = arith.constant 0 : index
    %4 = vector.load %arg3[%c0_2, %c0_3] : memref<8x128xbf16, #tpu.memory_space<vmem>>, vector<8x128xbf16>
    %c0_4 = arith.constant 0 : index
    %c0_5 = arith.constant 0 : index
    %5 = vector.load %arg4[%c0_4, %c0_5] : memref<128x128xbf16, #tpu.memory_space<vmem>>, vector<128x128xbf16>
    %cst = arith.constant dense<0.000000e+00> : vector<8x128xf32>
    %6 = tpu.matmul %4, %5, %cst {dimension_numbers = #tpu.dot_dimension_numbers<[1], [0], [0], [1], [0, 0, 1, 1], [], []>} : vector<8x128xbf16>, vector<128x128xbf16>, vector<8x128xf32> -> vector<8x128xf32>
    %7 = arith.addf %3, %6 : vector<8x128xf32>
    %c0_6 = arith.constant 0 : index
    %c0_7 = arith.constant 0 : index
    %8 = vector.load %arg6[%c0_6, %c0_7] : memref<8x128xf32, #tpu.memory_space<vmem>>, vector<8x128xf32>
    tpu.vector_store %arg6[%c0_6, %c0_7], %7 {strides = array<i32>} : memref<8x128xf32, #tpu.memory_space<vmem>>, vector<8x128xf32>,
    %c0_8 = arith.constant 0 : index
    %c0_9 = arith.constant 0 : index
    %9 = vector.load %arg4[%c0_8, %c0_9] : memref<128x128xbf16, #tpu.memory_space<vmem>>, vector<128x128xbf16>
    %10 = math.absf %9 : vector<128x128xbf16>
    %11 = arith.extf %10 : vector<128x128xbf16> to vector<128x128xf32>
    %12 = vector.shape_cast %11 : vector<128x128xf32> to vector<1x128x128xf32>
    %cst_10 = arith.constant dense<0.000000e+00> : vector<1xf32>
    %13 = vector.multi_reduction <add>, %12, %cst_10 [1, 2] : vector<1x128x128xf32> to vector<1xf32>
    %14 = vector.shape_cast %13 : vector<1xf32> to vector<1x1x1xf32>
    %15 = vector.extract %14[0, 0, 0] : f32 from vector<1x1x1xf32>
    %c0_11 = arith.constant 0 : index
    %c0_12 = arith.constant 0 : index
    %c0_13 = arith.constant 0 : index
    %16 = vector.load %arg7[%c0_11, %c0_12, %c0_13] : memref<1x8x128xf32, #tpu.memory_space<vmem>>, vector<1x8x128xf32>
    %17 = vector.broadcast %15 : f32 to vector<1x8x128xf32>
    %18 = arith.addf %16, %17 : vector<1x8x128xf32>
    %c0_14 = arith.constant 0 : index
    %c0_15 = arith.constant 0 : index
    %c0_16 = arith.constant 0 : index
    %19 = vector.load %arg7[%c0_14, %c0_15, %c0_16] : memref<1x8x128xf32, #tpu.memory_space<vmem>>, vector<1x8x128xf32>
    tpu.vector_store %arg7[%c0_14, %c0_15, %c0_16], %18 {strides = array<i32>} : memref<1x8x128xf32, #tpu.memory_space<vmem>>, vector<1x8x128xf32>,
    %c0_i32_17 = arith.constant 0 : i32
    %20 = arith.cmpi eq, %arg2, %c0_i32_17 : i32
    %21 = arith.extui %20 : i1 to i32
    %c0_i32_18 = arith.constant 0 : i32
    %22 = arith.cmpi ne, %21, %c0_i32_18 : i32
    scf.if %22 {
      %c0_19 = arith.constant 0 : index
      %c0_20 = arith.constant 0 : index
      %23 = vector.load %arg6[%c0_19, %c0_20] : memref<8x128xf32, #tpu.memory_space<vmem>>, vector<8x128xf32>
      %c0_21 = arith.constant 0 : index
      %c0_22 = arith.constant 0 : index
      %24 = vector.load %arg5[%c0_21, %c0_22] : memref<1x128xf32, #tpu.memory_space<vmem>>, vector<1x128xf32>
      %25 = vector.broadcast %24 : vector<1x128xf32> to vector<8x128xf32>
      %26 = arith.addf %23, %25 : vector<8x128xf32>
      %c0_23 = arith.constant 0 : index
      %c0_24 = arith.constant 0 : index
      %27 = vector.load %arg6[%c0_23, %c0_24] : memref<8x128xf32, #tpu.memory_space<vmem>>, vector<8x128xf32>
      tpu.vector_store %arg6[%c0_23, %c0_24], %26 {strides = array<i32>} : memref<8x128xf32, #tpu.memory_space<vmem>>, vector<8x128xf32>,
    } else {
    }
    return
  }
  func.func @transform_0(%arg0: i32, %arg1: i32, %arg2: i32) -> (i32, i32) {
    %c0_i32 = arith.constant 0 : i32
    return %arg0, %arg2 : i32, i32
  }
  func.func @transform_1(%arg0: i32, %arg1: i32, %arg2: i32) -> (i32, i32) {
    %c0_i32 = arith.constant 0 : i32
    return %arg2, %arg1 : i32, i32
  }
  func.func @transform_2(%arg0: i32, %arg1: i32, %arg2: i32) -> (i32, i32) {
    %c0_i32 = arith.constant 0 : i32
    %c0_i32_0 = arith.constant 0 : i32
    return %c0_i32, %arg1 : i32, i32
  }
  func.func @transform_3(%arg0: i32, %arg1: i32, %arg2: i32) -> (i32, i32) {
    %c0_i32 = arith.constant 0 : i32
    return %arg0, %arg1 : i32, i32
  }
  func.func @transform_4(%arg0: i32, %arg1: i32, %arg2: i32) -> (i32, i32, i32) {
    %c0_i32 = arith.constant 0 : i32
    %c0_i32_0 = arith.constant 0 : i32
    %c0_i32_1 = arith.constant 0 : i32
    return %arg1, %c0_i32, %c0_i32_0 : i32, i32, i32
  }
}

</mosaic_0001>

<llo_original>
// kernel: tpu_custom_call.1
$region0: #{tpu_custom_call.1}
  #allocation0 [shape = 'u32[]', space=smem, size = 0x4, offset = 0x4, fixed_abs, tag = 'smem constant byte address 0x4 - core index']
  #allocation1 [shape = 'u32[144,128]{1,0:T(1,128)}', space=vmem, size = 0x12000, scoped, tag = 'internal scratch']
  %s0 = inlined_call_operand.hbm [shape: bf16[8,128], index: 0, kind: input, shape index: {}]
  %s1 = inlined_call_operand.hbm [shape: bf16[128,128], index: 1, kind: input, shape index: {}]
  %s2 = inlined_call_operand.vmem [shape: f32[1,128], index: 2, kind: input, shape index: {}]
  %s3 = inlined_call_operand.hbm [shape: f32[8,128], index: 3, kind: output, shape index: {0}]
  %s4 = inlined_call_operand.hbm [shape: f32[1,8,128], index: 4, kind: output, shape index: {1}]
  %5 = xla_tuple %s3, %s4
  %s6 = sld [smem:[#allocation0]]
  $region46: #{tpu_custom_call.1} parent=0
    _
  %s8 = ssub.s32 1, %s6
  %s9 = scalar_select 0, %s8, %s6
  $region1: #{tpu_custom_call.1} parent=0
    #allocation2 [shape = 'u8[2048]{0}', space=vmem, size = 0x800, scoped, tag = 'input window, operand 0, single buffered']
    #allocation3 [shape = 's32[1]{0}', space=sflag, size = 0x4, scoped, tag = 'scoped memory for tpu_custom_call.1']
    #allocation4 [shape = 's32[1]{0}', space=sflag, size = 0x4, scoped, tag = 'scoped memory for tpu_custom_call.1']
    #allocation5 [shape = 'u8[32768]{0}', space=vmem, size = 0x8000, scoped, tag = 'input window, operand 1, single buffered']
    #allocation6 [shape = 's32[1]{0}', space=sflag, size = 0x4, scoped, tag = 'scoped memory for tpu_custom_call.1']
    #allocation7 [shape = 'u8[4096]{0}', space=vmem, size = 0x1000, scoped, tag = 'output window, operand 0, single buffered']
    #allocation8 [shape = 'u8[4096]{0}', space=vmem, size = 0x1000, scoped, tag = 'output window, operand 1, single buffered']
    #allocation9 [shape = 's32[1]{0}', space=sflag, size = 0x4, scoped, tag = 'scoped memory for tpu_custom_call.1']
    %10 = vsyncpa [#allocation3], 0
    %11 = vsyncpa [#allocation6], 0
    %12 = vsyncpa [#allocation4], 0
    %13 = vsyncpa [#allocation9], 0
    // Predicated region
    $region2: #{tpu_custom_call.1} parent=1 // pred_check
      _
    $region3: #{tpu_custom_call.1} parent=1 // pred_check_branch
      %15 = sbr.rel (0) target = $region5
    $region4: #{tpu_custom_call.1} parent=1 // pred_region
      %s17 = ssub.s32 64, 64
      %18 = vsyncadd [#allocation3], %s17
      %s20 = sshll.u32 [#allocation2], 4
      %s21 = int_to_ptr.vmem [resolvable:$true] %s20
      %23 = dma.hbm_to_vmem [thread:$0]  %s0, 64, %s21, [#allocation3]
    $region5: #{tpu_custom_call.1} parent=1 // pred_fallthru
      _
    // Predicated region
    $region6: #{tpu_custom_call.1} parent=1 // pred_check
      _
    $region7: #{tpu_custom_call.1} parent=1 // pred_check_branch
      %25 = sbr.rel (0) target = $region9
    $region8: #{tpu_custom_call.1} parent=1 // pred_region
      %s27 = ssub.s32 1024, 1024
      %28 = vsyncadd [#allocation6], %s27
      %s29 = sshll.u32 [#allocation5], 4
      %s30 = int_to_ptr.vmem [resolvable:$true] %s29
      %35 = dma.hbm_to_vmem [thread:$0]  %s1, 1024, %s30, [#allocation6], 64, 64, 4
    $region9: #{tpu_custom_call.1} parent=1 // pred_fallthru
      _
    // Predicated region
    $region10: #{tpu_custom_call.1} parent=1 // pred_check
      _
    $region11: #{tpu_custom_call.1} parent=1 // pred_check_branch
      %37 = sbr.rel (0) target = $region13
    $region12: #{tpu_custom_call.1} parent=1 // pred_region
      _
    $region13: #{tpu_custom_call.1} parent=1 // pred_fallthru
      _
    // Predicated region
    $region14: #{tpu_custom_call.1} parent=1 // pred_check
      _
    $region15: #{tpu_custom_call.1} parent=1 // pred_check_branch
      %39 = sbr.rel (0) target = $region17
    $region16: #{tpu_custom_call.1} parent=1 // pred_region
      %40 = dma.done [#allocation3], 64
    $region17: #{tpu_custom_call.1} parent=1 // pred_fallthru
      _
    // Predicated region
    $region18: #{tpu_custom_call.1} parent=1 // pred_check
      _
    $region19: #{tpu_custom_call.1} parent=1 // pred_check_branch
      %42 = sbr.rel (0) target = $region21
    $region20: #{tpu_custom_call.1} parent=1 // pred_region
      %43 = dma.done [#allocation6], 1024
    $region21: #{tpu_custom_call.1} parent=1 // pred_fallthru
      _
    %p45 = scmp.eq.s32.totalorder 0, 0
    // Predicated region
    $region22: #{tpu_custom_call.1} parent=1 // pred_check
      %p46 = pneg %p45
    $region23: #{tpu_custom_call.1} parent=1 // pred_check_branch
      %48 = sbr.rel (%p46) target = $region25
    $region24: #{tpu_custom_call.1} parent=1 // pred_region
      %49 = vst [vmem:[#allocation7] sm:$0xff] 0.0
      %50 = vst [vmem:[#allocation8] sm:$0xff] 0.0
    $region25: #{tpu_custom_call.1} parent=1 // pred_fallthru
      _
    %v51 = vld [vmem:[#allocation7] sm:$0xff]
    %v52 = vld [vmem:[#allocation2] sm:$0xf]
    %v53 = vld [vmem:[#allocation5] sm:$0xf]
    %v54 = vld [vmem:[#allocation5 + $0x4] sm:$0xf]
    %v55 = vld [vmem:[#allocation5 + $0x8] sm:$0xf]
    %v56 = vld [vmem:[#allocation5 + $0xc] sm:$0xf]
    %v57 = vld [vmem:[#allocation5 + $0x10] sm:$0xf]
    %v58 = vld [vmem:[#allocation5 + $0x14] sm:$0xf]
    %v59 = vld [vmem:[#allocation5 + $0x18] sm:$0xf]
    %v60 = vld [vmem:[#allocation5 + $0x1c] sm:$0xf]
    %v61 = vld [vmem:[#allocation5 + $0x20] sm:$0xf]
    %v62 = vld [vmem:[#allocation5 + $0x24] sm:$0xf]
    %v63 = vld [vmem:[#allocation5 + $0x28] sm:$0xf]
    %v64 = vld [vmem:[#allocation5 + $0x2c] sm:$0xf]
    %v65 = vld [vmem:[#allocation5 + $0x30] sm:$0xf]
    %v66 = vld [vmem:[#allocation5 + $0x34] sm:$0xf]
    %v67 = vld [vmem:[#allocation5 + $0x38] sm:$0xf]
    %v68 = vld [vmem:[#allocation5 + $0x3c] sm:$0xf]
    %v85 = vunpack.c.l.b16 %v53
    %v86 = vunpack.c.l.b16 %v54
    %v87 = vunpack.c.l.b16 %v55
    %v88 = vunpack.c.l.b16 %v56
    %v89 = vunpack.c.l.b16 %v57
    %v90 = vunpack.c.l.b16 %v58
    %v91 = vunpack.c.l.b16 %v59
    %v92 = vunpack.c.l.b16 %v60
    %v93 = vunpack.c.l.b16 %v61
    %v94 = vunpack.c.l.b16 %v62
    %v95 = vunpack.c.l.b16 %v63
    %v96 = vunpack.c.l.b16 %v64
    %v97 = vunpack.c.l.b16 %v65
    %v98 = vunpack.c.l.b16 %v66
    %v99 = vunpack.c.l.b16 %v67
    %v100 = vunpack.c.l.b16 %v68
    %v101 = vpack.c.b16 %v86, %v85
    %v102 = vpack.c.b16 %v88, %v87
    %v103 = vpack.c.b16 %v90, %v89
    %v104 = vpack.c.b16 %v92, %v91
    %v105 = vpack.c.b16 %v94, %v93
    %v106 = vpack.c.b16 %v96, %v95
    %v107 = vpack.c.b16 %v98, %v97
    %v108 = vpack.c.b16 %v100, %v99
    %117 = vmatprep.subr.bf16.mxu0 0
    %118 = vmatpush1.bf16.msra.mxu0 %v108
    %119 = vmatprep.subr.bf16.mxu0 0
    %120 = vmatpush1.bf16.msra.mxu0 %v107
    %121 = vmatprep.subr.bf16.mxu0 0
    %122 = vmatpush1.bf16.msra.mxu0 %v106
    %123 = vmatprep.subr.bf16.mxu0 0
    %124 = vmatpush1.bf16.msra.mxu0 %v105
    %125 = vmatprep.subr.bf16.mxu0 0
    %126 = vmatpush1.bf16.msra.mxu0 %v104
    %127 = vmatprep.subr.bf16.mxu0 0
    %128 = vmatpush1.bf16.msra.mxu0 %v103
    %129 = vmatprep.subr.bf16.mxu0 0
    %130 = vmatpush1.bf16.msra.mxu0 %v102
    %131 = vmatprep.subr.bf16.mxu0 0
    %132 = vmatpush1.bf16.msra.mxu0 %v101
    %133 = vmatprep.subr.bf16.mxu0 0
    %134 = vmatpush2.bf16.msra.mxu0 0
    %135 = vmatprep.subr.bf16.mxu0 0
    %136 = vmatpush2.bf16.msra.mxu0 0
    %137 = vmatprep.subr.bf16.mxu0 0
    %138 = vmatpush2.bf16.msra.mxu0 0
    %139 = vmatprep.subr.bf16.mxu0 0
    %140 = vmatpush2.bf16.msra.mxu0 0
    %141 = vmatprep.subr.bf16.mxu0 0
    %142 = vmatpush2.bf16.msra.mxu0 0
    %143 = vmatprep.subr.bf16.mxu0 0
    %144 = vmatpush2.bf16.msra.mxu0 0
    %145 = vmatprep.subr.bf16.mxu0 0
    %146 = vmatpush2.bf16.msra.mxu0 0
    %147 = vmatprep.subr.bf16.mxu0 0
    %148 = vmatpush2.bf16.msra.mxu0 0
    %149 = vmatprep.mubr.bf16.mxu0 0
    %150 = vmatmul.mubr.bf16.gmra.mxu0 %v52
    %v151 = vpop.f32.mrf.mxu0
    %v152 = vadd.f32 0.0, %v151
    %v153 = vpop.f32.mrf.mxu0
    %v154 = vpop.f32.mrf.mxu0
    %v155 = vpop.f32.mrf.mxu0
    %156 = vdwg.mxu0
    %v157 = vadd.f32 %v51, %v152
    %158 = vst [vmem:[#allocation7] sm:$0xff] %v157
    %v159 = vld [vmem:[#allocation5] sm:$0xf]
    %v160 = vld [vmem:[#allocation5 + $0x4] sm:$0xf]
    %v161 = vld [vmem:[#allocation5 + $0x8] sm:$0xf]
    %v162 = vld [vmem:[#allocation5 + $0xc] sm:$0xf]
    %v163 = vld [vmem:[#allocation5 + $0x10] sm:$0xf]
    %v164 = vld [vmem:[#allocation5 + $0x14] sm:$0xf]
    %v165 = vld [vmem:[#allocation5 + $0x18] sm:$0xf]
    %v166 = vld [vmem:[#allocation5 + $0x1c] sm:$0xf]
    %v167 = vld [vmem:[#allocation5 + $0x20] sm:$0xf]
    %v168 = vld [vmem:[#allocation5 + $0x24] sm:$0xf]
    %v169 = vld [vmem:[#allocation5 + $0x28] sm:$0xf]
    %v170 = vld [vmem:[#allocation5 + $0x2c] sm:$0xf]
    %v171 = vld [vmem:[#allocation5 + $0x30] sm:$0xf]
    %v172 = vld [vmem:[#allocation5 + $0x34] sm:$0xf]
    %v173 = vld [vmem:[#allocation5 + $0x38] sm:$0xf]
    %v174 = vld [vmem:[#allocation5 + $0x3c] sm:$0xf]
    %v175 = vand.u32 2147450879, %v159
    %v176 = vand.u32 2147450879, %v160
    %v177 = vand.u32 2147450879, %v161
    %v178 = vand.u32 2147450879, %v162
    %v179 = vand.u32 2147450879, %v163
    %v180 = vand.u32 2147450879, %v164
    %v181 = vand.u32 2147450879, %v165
    %v182 = vand.u32 2147450879, %v166
    %v183 = vand.u32 2147450879, %v167
    %v184 = vand.u32 2147450879, %v168
    %v185 = vand.u32 2147450879, %v169
    %v186 = vand.u32 2147450879, %v170
    %v187 = vand.u32 2147450879, %v171
    %v188 = vand.u32 2147450879, %v172
    %v189 = vand.u32 2147450879, %v173
    %v190 = vand.u32 2147450879, %v174
    %v191 = vunpack.c.l.bf16 %v175
    %v192 = vunpack.c.l.bf16 %v176
    %v193 = vunpack.c.l.bf16 %v177
    %v194 = vunpack.c.l.bf16 %v178
    %v195 = vunpack.c.l.bf16 %v179
    %v196 = vunpack.c.l.bf16 %v180
    %v197 = vunpack.c.l.bf16 %v181
    %v198 = vunpack.c.l.bf16 %v182
    %v199 = vunpack.c.l.bf16 %v183
    %v200 = vunpack.c.l.bf16 %v184
    %v201 = vunpack.c.l.bf16 %v185
    %v202 = vunpack.c.l.bf16 %v186
    %v203 = vunpack.c.l.bf16 %v187
    %v204 = vunpack.c.l.bf16 %v188
    %v205 = vunpack.c.l.bf16 %v189
    %v206 = vunpack.c.l.bf16 %v190
    %v207 = vadd.f32 %v191, %v192
    %v208 = vadd.f32 %v207, %v193
    %v209 = vadd.f32 %v208, %v194
    %v210 = vadd.f32 %v209, %v195
    %v211 = vadd.f32 %v210, %v196
    %v212 = vadd.f32 %v211, %v197
    %v213 = vadd.f32 %v212, %v198
    %v214 = vadd.f32 %v213, %v199
    %v215 = vadd.f32 %v214, %v200
    %v216 = vadd.f32 %v215, %v201
    %v217 = vadd.f32 %v216, %v202
    %v218 = vadd.f32 %v217, %v203
    %v219 = vadd.f32 %v218, %v204
    %v220 = vadd.f32 %v219, %v205
    %v221 = vadd.f32 %v220, %v206
    %222 = vadd.xlane.f32.xlu0 %v221
    %v223 = vpop.xlane.xlu0 %222
    %v224 = vrot.slane %v223, 4
    %v225 = vadd.f32 %v223, %v224
    %v226 = vrot.slane %v225, 2
    %v227 = vadd.f32 %v225, %v226
    %v228 = vrot.slane %v227, 1
    %v229 = vadd.f32 %v227, %v228
    %s230 = vtos %v229
    %v231 = vld [vmem:[#allocation8] sm:$0xff]
    %v232 = vstv %s230
    %v233 = vadd.f32 %v231, %v232
    %234 = vst [vmem:[#allocation8] sm:$0xff] %v233
    // Predicated region
    $region26: #{tpu_custom_call.1} parent=1 // pred_check
      %p235 = pneg %p45
    $region27: #{tpu_custom_call.1} parent=1 // pred_check_branch
      %237 = sbr.rel (%p235) target = $region29
    $region28: #{tpu_custom_call.1} parent=1 // pred_region
      %v238 = vld [vmem:[#allocation7] sm:$0xff]
      %v239 = vld [vmem:[%s2] sm:$0x1]
      %v241 = vlaneseq
      %v242 = vshrl.u32 %v241, 7
      %v243 = vsub.s32 0, %v242
      %v244 = vrot.slane %v239, %v243
      %v246 = vadd.f32 %v238, %v244
      %247 = vst [vmem:[#allocation7] sm:$0xff] %v246
    $region29: #{tpu_custom_call.1} parent=1 // pred_fallthru
      _
    // Predicated region
    $region30: #{tpu_custom_call.1} parent=1 // pred_check
      _
    $region31: #{tpu_custom_call.1} parent=1 // pred_check_branch
      %249 = sbr.rel (0) target = $region33
    $region32: #{tpu_custom_call.1} parent=1 // pred_region
      %s251 = ssub.s32 128, 128
      %252 = vsyncadd [#allocation4], %s251
      %s254 = sshll.u32 [#allocation7], 4
      %s255 = int_to_ptr.vmem [resolvable:$true] %s254
      %257 = dma.vmem_to_hbm [thread:$0]  %s255, 128, %s3, [#allocation4]
    $region33: #{tpu_custom_call.1} parent=1 // pred_fallthru
      _
    // Predicated region
    $region34: #{tpu_custom_call.1} parent=1 // pred_check
      _
    $region35: #{tpu_custom_call.1} parent=1 // pred_check_branch
      %259 = sbr.rel (0) target = $region37
    $region36: #{tpu_custom_call.1} parent=1 // pred_region
      %s261 = ssub.s32 128, 128
      %262 = vsyncadd [#allocation9], %s261
      %s264 = sshll.u32 [#allocation8], 4
      %s265 = int_to_ptr.vmem [resolvable:$true] %s264
      %267 = dma.vmem_to_hbm [thread:$0]  %s265, 128, %s4, [#allocation9]
    $region37: #{tpu_custom_call.1} parent=1 // pred_fallthru
      _
    // Predicated region
    $region38: #{tpu_custom_call.1} parent=1 // pred_check
      _
    $region39: #{tpu_custom_call.1} parent=1 // pred_check_branch
      %269 = sbr.rel (0) target = $region41
    $region40: #{tpu_custom_call.1} parent=1 // pred_region
      %270 = dma.done [#allocation4], 128
    $region41: #{tpu_custom_call.1} parent=1 // pred_fallthru
      _
    // Predicated region
    $region42: #{tpu_custom_call.1} parent=1 // pred_check
      _
    $region43: #{tpu_custom_call.1} parent=1 // pred_check_branch
      %272 = sbr.rel (0) target = $region45
    $region44: #{tpu_custom_call.1} parent=1 // pred_region
      %273 = dma.done [#allocation9], 128
    $region45: #{tpu_custom_call.1} parent=1 // pred_fallthru
      _
    %274 = vsyncpa [#allocation3], 1
    %275 = vsyncpa [#allocation6], 1
    %276 = vsyncpa [#allocation4], 1
    %277 = vsyncpa [#allocation9], 1

</llo_original>
